<compile_context>
chip_gen: v7x
topology: tpu7x:2x2x1
jax: 0.10.0
libtpu: 0.0.40
codegen_flags: <defaults>
</compile_context>

<pallas_src>
import functools
from math import sqrt

import jax
import jax.numpy as jnp
from jax import lax
from jax.experimental import pallas as pl
from jax.experimental.pallas import tpu as pltpu


def _attention_kernel(x_ref, wqkv_ref, wo_ref, bo_ref, o_ref, ov_scratch,
                      *, heads, dim_head, n_real):
    """One grid step = one batch element; all heads processed in-body.

    x_ref      : (Np, dim)        bf16   (rows beyond n_real are zero padding)
    wqkv_ref   : (dim, 3*inner)   bf16   resident (constant index map); q cols pre-scaled
    wo_ref     : (inner, dim)     bf16   resident
    bo_ref     : (1, dim)         f32    resident
    o_ref      : (Np, dim)        out dtype
    ov_scratch : (Np, inner)      bf16   lane-packed per-head attention outputs
    """
    inner = heads * dim_head
    Np = x_ref.shape[0]

    xb = x_ref[...]                                                  # (Np, dim) bf16

    # Fused q/k/v projection for all heads at once: full MXU contraction depth
    # (dim) and full lane width (3*inner).  Softmax scale is already folded
    # into the q columns of W_qkv (weight prep), so no in-kernel q*scale.
    qkv = jnp.dot(xb, wqkv_ref[...],
                  preferred_element_type=jnp.float32).astype(jnp.bfloat16)

    if Np > n_real:
        key_mask = lax.broadcasted_iota(jnp.int32, (1, Np), 1) < n_real

    # Static (unrolled) loop over the compile-time head count.  Each head's
    # intermediates die into its ov_scratch lane slice, so live ranges stay
    # one-head sized.
    for h in range(heads):
        q = qkv[:, h * dim_head:(h + 1) * dim_head]                  # (Np, dh)
        k = qkv[:, inner + h * dim_head: inner + (h + 1) * dim_head]
        v = qkv[:, 2 * inner + h * dim_head: 2 * inner + (h + 1) * dim_head]

        # Scores: contract the dh axis of both operands (no materialized k^T).
        dots = lax.dot_general(
            q, k, dimension_numbers=(((1,), (1,)), ((), ())),
            preferred_element_type=jnp.float32)                      # (Np, Np) f32
        if Np > n_real:
            dots = jnp.where(key_mask, dots, -jnp.inf)               # mask padded keys

        # Softmax (f32 max/exp/sum); normalization deferred past attn@v.
        m = jnp.max(dots, axis=-1, keepdims=True)
        e = jnp.exp(dots - m)
        r = pl.reciprocal(jnp.sum(e, axis=-1, keepdims=True), approx=True)

        ov = jnp.dot(e.astype(jnp.bfloat16), v,
                     preferred_element_type=jnp.float32) * r          # (Np, dh) f32
        ov_scratch[:, h * dim_head:(h + 1) * dim_head] = ov.astype(jnp.bfloat16)

    # Single fused output projection over all heads: contraction depth = inner,
    # full lane-width output.  Bias added once in f32.
    out = jnp.dot(ov_scratch[...], wo_ref[...],
                  preferred_element_type=jnp.float32) + bo_ref[...]
    o_ref[...] = out.astype(o_ref.dtype)


def prepare_attention_weights(w_qkv, w_out, b_out, *, heads, dim_head):
    """One-time (model-init) weight layout prep: fold softmax scale into W_q,
    cast MXU operands to bf16, reshape bias to (1, dim)."""
    dim = w_qkv.shape[0]
    inner = heads * dim_head
    assert w_qkv.shape == (dim, 3 * inner)
    assert w_out.shape == (inner, dim)
    scale = dim_head ** (-0.5)
    w_qkv_p = jnp.concatenate(
        [w_qkv[:, :inner] * scale, w_qkv[:, inner:]], axis=1).astype(jnp.bfloat16)
    w_out_p = w_out.astype(jnp.bfloat16)
    b_out_p = b_out.reshape(1, dim).astype(jnp.float32)
    return w_qkv_p, w_out_p, b_out_p


def attention_forward(x, w_qkv_p, w_out_p, b_out_p, *, heads, dim_head):
    """x: (B, N, dim); prepared weights from prepare_attention_weights."""
    B, N, dim = x.shape
    inner = heads * dim_head
    out_dtype = x.dtype

    # Pad the sequence length to a sublane multiple (unmasked vst, clean vregs).
    # Padded key columns are masked inside the kernel; padded rows are sliced off.
    Np = ((N + 7) // 8) * 8
    x_bf = x.astype(jnp.bfloat16)
    if Np != N:
        x_bf = jnp.pad(x_bf, ((0, 0), (0, Np - N), (0, 0)))

    kernel = functools.partial(_attention_kernel, heads=heads,
                               dim_head=dim_head, n_real=N)

    # NOTE: for very long sequences a query-tile grid axis should be added so
    # only a (TILE_Q, Np) score tile is live (v7x has 64 MiB VMEM); not needed
    # at ViT scale.
    out = pl.pallas_call(
        kernel,
        out_shape=jax.ShapeDtypeStruct((B, Np, dim), out_dtype),
        grid_spec=pltpu.PrefetchScalarGridSpec(
            num_scalar_prefetch=0,
            grid=(B,),
            in_specs=[
                pl.BlockSpec((None, Np, dim), lambda b: (b, 0, 0)),     # x[b]
                pl.BlockSpec((dim, 3 * inner), lambda b: (0, 0)),       # W_qkv (resident)
                pl.BlockSpec((inner, dim), lambda b: (0, 0)),           # W_out (resident)
                pl.BlockSpec((1, dim), lambda b: (0, 0)),               # bias  (resident)
            ],
            out_specs=pl.BlockSpec((None, Np, dim), lambda b: (b, 0, 0)),
            scratch_shapes=[pltpu.VMEM((Np, inner), jnp.bfloat16)],
        ),
        compiler_params=pltpu.CompilerParams(
            dimension_semantics=("parallel",),   # batch axis shards across v7x TCs
            vmem_limit_bytes=24 * 1024 * 1024,
        ),
    )(x_bf, w_qkv_p, w_out_p, b_out_p)

    if Np != N:
        out = out[:, :N, :]
    return out


def attention_reference(x, w_qkv, w_out, b_out, *, heads, dim_head):
    """Plain-JAX f32 reference matching the PyTorch module."""
    B, N, dim = x.shape
    inner = heads * dim_head
    scale = dim_head ** (-0.5)
    qkv = x @ w_qkv
    q, k, v = jnp.split(qkv, 3, axis=-1)

    def split_heads(t):
        return t.reshape(B, N, heads, dim_head).transpose(0, 2, 1, 3)

    q, k, v = map(split_heads, (q, k, v))
    dots = jnp.einsum("bhnd,bhmd->bhnm", q, k) * scale
    attn = jax.nn.softmax(dots, axis=-1)
    out = jnp.einsum("bhnm,bhmd->bhnd", attn, v)
    out = out.transpose(0, 2, 1, 3).reshape(B, N, inner)
    return out @ w_out + b_out


if __name__ == "__main__":
    # Small, module-consistent shapes.
    B, N, dim = 2, 8, 32
    heads, dim_head = 4, 8
    inner = heads * dim_head

    key = jax.random.PRNGKey(0)
    kx, kq, ko, kb = jax.random.split(key, 4)
    x = jax.random.normal(kx, (B, N, dim), dtype=jnp.float32)
    w_qkv = jax.random.normal(kq, (dim, 3 * inner), dtype=jnp.float32) / sqrt(dim)
    w_out = jax.random.normal(ko, (inner, dim), dtype=jnp.float32) / sqrt(inner)
    b_out = jax.random.normal(kb, (dim,), dtype=jnp.float32) * 0.01

    # One-time weight layout prep (model init), then forward.
    w_qkv_p, w_out_p, b_out_p = prepare_attention_weights(
        w_qkv, w_out, b_out, heads=heads, dim_head=dim_head)
    y = attention_forward(x, w_qkv_p, w_out_p, b_out_p,
                          heads=heads, dim_head=dim_head)
    y = jax.block_until_ready(y)

    y_ref = attention_reference(x, w_qkv, w_out, b_out, heads=heads, dim_head=dim_head)
    assert y.shape == (B, N, dim)
    # bf16 MXU operands (f32 accumulation) -> relaxed tolerance vs f32 reference.
    assert jnp.allclose(y, y_ref, atol=5e-2, rtol=5e-2), (
        "mismatch vs reference; max abs diff = "
        f"{float(jnp.max(jnp.abs(y - y_ref)))}")

    print("KERNEL_OK")
</pallas_src>

<mosaic_0001>
module attributes {stable_mosaic.version = 11 : i64} {
  func.func @_attention_kernel(%arg0: i32, %arg1: memref<1x8x32xbf16, #tpu.memory_space<vmem>>, %arg2: memref<32x96xbf16, #tpu.memory_space<vmem>>, %arg3: memref<32x32xbf16, #tpu.memory_space<vmem>>, %arg4: memref<1x32xf32, #tpu.memory_space<vmem>>, %arg5: memref<1x8x32xf32, #tpu.memory_space<vmem>>, %arg6: memref<8x32xbf16, #tpu.memory_space<vmem>>) attributes {dimension_semantics = [#tpu.dimension_semantics<parallel>], iteration_bounds = array<i64: 2>, scalar_prefetch = 0 : i64, scratch_operands = 1 : i64, tpu.core_type = #tpu.core_type<tc>, window_params = [{transform_indices = @transform_0, window_bounds = array<i64: 1, 8, 32>}, {pipeline_mode = #tpu.pipeline_mode<synchronous>, transform_indices = @transform_1, window_bounds = array<i64: 32, 96>}, {pipeline_mode = #tpu.pipeline_mode<synchronous>, transform_indices = @transform_2, window_bounds = array<i64: 32, 32>}, {pipeline_mode = #tpu.pipeline_mode<synchronous>, transform_indices = @transform_3, window_bounds = array<i64: 1, 32>}, {transform_indices = @transform_4, window_bounds = array<i64: 1, 8, 32>}]} {
    %c0 = arith.constant 0 : index
    %c0_0 = arith.constant 0 : index
    %c0_1 = arith.constant 0 : index
    %0 = vector.load %arg1[%c0, %c0_0, %c0_1] : memref<1x8x32xbf16, #tpu.memory_space<vmem>>, vector<1x8x32xbf16>
    %1 = vector.shape_cast %0 : vector<1x8x32xbf16> to vector<8x32xbf16>
    %c0_2 = arith.constant 0 : index
    %c0_3 = arith.constant 0 : index
    %2 = vector.load %arg2[%c0_2, %c0_3] : memref<32x96xbf16, #tpu.memory_space<vmem>>, vector<32x96xbf16>
    %cst = arith.constant dense<0.000000e+00> : vector<8x96xf32>
    %3 = tpu.matmul %1, %2, %cst {dimension_numbers = #tpu.dot_dimension_numbers<[1], [0], [0], [1], [0, 0, 1, 1], [], []>} : vector<8x32xbf16>, vector<32x96xbf16>, vector<8x96xf32> -> vector<8x96xf32>
    %4 = arith.truncf %3 : vector<8x96xf32> to vector<8x96xbf16>
    %5 = vector.extract_strided_slice %4 {offsets = [0, 0], sizes = [8, 8], strides = [1, 1]} : vector<8x96xbf16> to vector<8x8xbf16>
    %6 = vector.extract_strided_slice %4 {offsets = [0, 32], sizes = [8, 8], strides = [1, 1]} : vector<8x96xbf16> to vector<8x8xbf16>
    %7 = vector.extract_strided_slice %4 {offsets = [0, 64], sizes = [8, 8], strides = [1, 1]} : vector<8x96xbf16> to vector<8x8xbf16>
    %cst_4 = arith.constant dense<0.000000e+00> : vector<8x8xf32>
    %8 = tpu.matmul %5, %6, %cst_4 {dimension_numbers = #tpu.dot_dimension_numbers<[1], [1], [0], [0], [0, 0, 1, 0], [], []>} : vector<8x8xbf16>, vector<8x8xbf16>, vector<8x8xf32> -> vector<8x8xf32>
    %cst_5 = arith.constant dense<0xFF800000> : vector<8xf32>
    %9 = vector.multi_reduction <maximumf>, %8, %cst_5 [1] : vector<8x8xf32> to vector<8xf32>
    %10 = vector.shape_cast %9 : vector<8xf32> to vector<8x1xf32>
    %11 = vector.broadcast %10 : vector<8x1xf32> to vector<8x8xf32>
    %12 = arith.subf %8, %11 : vector<8x8xf32>
    %13 = math.exp %12 : vector<8x8xf32>
    %cst_6 = arith.constant dense<0.000000e+00> : vector<8xf32>
    %14 = vector.multi_reduction <add>, %13, %cst_6 [1] : vector<8x8xf32> to vector<8xf32>
    %15 = vector.shape_cast %14 : vector<8xf32> to vector<8x1xf32>
    %16 = tpu.reciprocal %15 {approx = true} : vector<8x1xf32> -> vector<8x1xf32>
    %17 = arith.truncf %13 : vector<8x8xf32> to vector<8x8xbf16>
    %cst_7 = arith.constant dense<0.000000e+00> : vector<8x8xf32>
    %18 = tpu.matmul %17, %7, %cst_7 {dimension_numbers = #tpu.dot_dimension_numbers<[1], [0], [0], [1], [0, 0, 1, 1], [], []>} : vector<8x8xbf16>, vector<8x8xbf16>, vector<8x8xf32> -> vector<8x8xf32>
    %19 = vector.broadcast %16 : vector<8x1xf32> to vector<8x8xf32>
    %20 = arith.mulf %18, %19 : vector<8x8xf32>
    %21 = arith.truncf %20 : vector<8x8xf32> to vector<8x8xbf16>
    %c0_8 = arith.constant 0 : index
    %c0_9 = arith.constant 0 : index
    %22 = vector.load %arg6[%c0_8, %c0_9] : memref<8x32xbf16, #tpu.memory_space<vmem>>, vector<8x8xbf16>
    tpu.vector_store %arg6[%c0_8, %c0_9], %21 {strides = array<i32>} : memref<8x32xbf16, #tpu.memory_space<vmem>>, vector<8x8xbf16>,
    %23 = vector.extract_strided_slice %4 {offsets = [0, 8], sizes = [8, 8], strides = [1, 1]} : vector<8x96xbf16> to vector<8x8xbf16>
    %24 = vector.extract_strided_slice %4 {offsets = [0, 40], sizes = [8, 8], strides = [1, 1]} : vector<8x96xbf16> to vector<8x8xbf16>
    %25 = vector.extract_strided_slice %4 {offsets = [0, 72], sizes = [8, 8], strides = [1, 1]} : vector<8x96xbf16> to vector<8x8xbf16>
    %cst_10 = arith.constant dense<0.000000e+00> : vector<8x8xf32>
    %26 = tpu.matmul %23, %24, %cst_10 {dimension_numbers = #tpu.dot_dimension_numbers<[1], [1], [0], [0], [0, 0, 1, 0], [], []>} : vector<8x8xbf16>, vector<8x8xbf16>, vector<8x8xf32> -> vector<8x8xf32>
    %cst_11 = arith.constant dense<0xFF800000> : vector<8xf32>
    %27 = vector.multi_reduction <maximumf>, %26, %cst_11 [1] : vector<8x8xf32> to vector<8xf32>
    %28 = vector.shape_cast %27 : vector<8xf32> to vector<8x1xf32>
    %29 = vector.broadcast %28 : vector<8x1xf32> to vector<8x8xf32>
    %30 = arith.subf %26, %29 : vector<8x8xf32>
    %31 = math.exp %30 : vector<8x8xf32>
    %cst_12 = arith.constant dense<0.000000e+00> : vector<8xf32>
    %32 = vector.multi_reduction <add>, %31, %cst_12 [1] : vector<8x8xf32> to vector<8xf32>
    %33 = vector.shape_cast %32 : vector<8xf32> to vector<8x1xf32>
    %34 = tpu.reciprocal %33 {approx = true} : vector<8x1xf32> -> vector<8x1xf32>
    %35 = arith.truncf %31 : vector<8x8xf32> to vector<8x8xbf16>
    %cst_13 = arith.constant dense<0.000000e+00> : vector<8x8xf32>
    %36 = tpu.matmul %35, %25, %cst_13 {dimension_numbers = #tpu.dot_dimension_numbers<[1], [0], [0], [1], [0, 0, 1, 1], [], []>} : vector<8x8xbf16>, vector<8x8xbf16>, vector<8x8xf32> -> vector<8x8xf32>
    %37 = vector.broadcast %34 : vector<8x1xf32> to vector<8x8xf32>
    %38 = arith.mulf %36, %37 : vector<8x8xf32>
    %39 = arith.truncf %38 : vector<8x8xf32> to vector<8x8xbf16>
    %c0_14 = arith.constant 0 : index
    %c8 = arith.constant 8 : index
    %40 = vector.load %arg6[%c0_14, %c8] : memref<8x32xbf16, #tpu.memory_space<vmem>>, vector<8x8xbf16>
    tpu.vector_store %arg6[%c0_14, %c8], %39 {strides = array<i32>} : memref<8x32xbf16, #tpu.memory_space<vmem>>, vector<8x8xbf16>,
    %41 = vector.extract_strided_slice %4 {offsets = [0, 16], sizes = [8, 8], strides = [1, 1]} : vector<8x96xbf16> to vector<8x8xbf16>
    %42 = vector.extract_strided_slice %4 {offsets = [0, 48], sizes = [8, 8], strides = [1, 1]} : vector<8x96xbf16> to vector<8x8xbf16>
    %43 = vector.extract_strided_slice %4 {offsets = [0, 80], sizes = [8, 8], strides = [1, 1]} : vector<8x96xbf16> to vector<8x8xbf16>
    %cst_15 = arith.constant dense<0.000000e+00> : vector<8x8xf32>
    %44 = tpu.matmul %41, %42, %cst_15 {dimension_numbers = #tpu.dot_dimension_numbers<[1], [1], [0], [0], [0, 0, 1, 0], [], []>} : vector<8x8xbf16>, vector<8x8xbf16>, vector<8x8xf32> -> vector<8x8xf32>
    %cst_16 = arith.constant dense<0xFF800000> : vector<8xf32>
    %45 = vector.multi_reduction <maximumf>, %44, %cst_16 [1] : vector<8x8xf32> to vector<8xf32>
    %46 = vector.shape_cast %45 : vector<8xf32> to vector<8x1xf32>
    %47 = vector.broadcast %46 : vector<8x1xf32> to vector<8x8xf32>
    %48 = arith.subf %44, %47 : vector<8x8xf32>
    %49 = math.exp %48 : vector<8x8xf32>
    %cst_17 = arith.constant dense<0.000000e+00> : vector<8xf32>
    %50 = vector.multi_reduction <add>, %49, %cst_17 [1] : vector<8x8xf32> to vector<8xf32>
    %51 = vector.shape_cast %50 : vector<8xf32> to vector<8x1xf32>
    %52 = tpu.reciprocal %51 {approx = true} : vector<8x1xf32> -> vector<8x1xf32>
    %53 = arith.truncf %49 : vector<8x8xf32> to vector<8x8xbf16>
    %cst_18 = arith.constant dense<0.000000e+00> : vector<8x8xf32>
    %54 = tpu.matmul %53, %43, %cst_18 {dimension_numbers = #tpu.dot_dimension_numbers<[1], [0], [0], [1], [0, 0, 1, 1], [], []>} : vector<8x8xbf16>, vector<8x8xbf16>, vector<8x8xf32> -> vector<8x8xf32>
    %55 = vector.broadcast %52 : vector<8x1xf32> to vector<8x8xf32>
    %56 = arith.mulf %54, %55 : vector<8x8xf32>
    %57 = arith.truncf %56 : vector<8x8xf32> to vector<8x8xbf16>
    %c0_19 = arith.constant 0 : index
    %c16 = arith.constant 16 : index
    %58 = vector.load %arg6[%c0_19, %c16] : memref<8x32xbf16, #tpu.memory_space<vmem>>, vector<8x8xbf16>
    tpu.vector_store %arg6[%c0_19, %c16], %57 {strides = array<i32>} : memref<8x32xbf16, #tpu.memory_space<vmem>>, vector<8x8xbf16>,
    %59 = vector.extract_strided_slice %4 {offsets = [0, 24], sizes = [8, 8], strides = [1, 1]} : vector<8x96xbf16> to vector<8x8xbf16>
    %60 = vector.extract_strided_slice %4 {offsets = [0, 56], sizes = [8, 8], strides = [1, 1]} : vector<8x96xbf16> to vector<8x8xbf16>
    %61 = vector.extract_strided_slice %4 {offsets = [0, 88], sizes = [8, 8], strides = [1, 1]} : vector<8x96xbf16> to vector<8x8xbf16>
    %cst_20 = arith.constant dense<0.000000e+00> : vector<8x8xf32>
    %62 = tpu.matmul %59, %60, %cst_20 {dimension_numbers = #tpu.dot_dimension_numbers<[1], [1], [0], [0], [0, 0, 1, 0], [], []>} : vector<8x8xbf16>, vector<8x8xbf16>, vector<8x8xf32> -> vector<8x8xf32>
    %cst_21 = arith.constant dense<0xFF800000> : vector<8xf32>
    %63 = vector.multi_reduction <maximumf>, %62, %cst_21 [1] : vector<8x8xf32> to vector<8xf32>
    %64 = vector.shape_cast %63 : vector<8xf32> to vector<8x1xf32>
    %65 = vector.broadcast %64 : vector<8x1xf32> to vector<8x8xf32>
    %66 = arith.subf %62, %65 : vector<8x8xf32>
    %67 = math.exp %66 : vector<8x8xf32>
    %cst_22 = arith.constant dense<0.000000e+00> : vector<8xf32>
    %68 = vector.multi_reduction <add>, %67, %cst_22 [1] : vector<8x8xf32> to vector<8xf32>
    %69 = vector.shape_cast %68 : vector<8xf32> to vector<8x1xf32>
    %70 = tpu.reciprocal %69 {approx = true} : vector<8x1xf32> -> vector<8x1xf32>
    %71 = arith.truncf %67 : vector<8x8xf32> to vector<8x8xbf16>
    %cst_23 = arith.constant dense<0.000000e+00> : vector<8x8xf32>
    %72 = tpu.matmul %71, %61, %cst_23 {dimension_numbers = #tpu.dot_dimension_numbers<[1], [0], [0], [1], [0, 0, 1, 1], [], []>} : vector<8x8xbf16>, vector<8x8xbf16>, vector<8x8xf32> -> vector<8x8xf32>
    %73 = vector.broadcast %70 : vector<8x1xf32> to vector<8x8xf32>
    %74 = arith.mulf %72, %73 : vector<8x8xf32>
    %75 = arith.truncf %74 : vector<8x8xf32> to vector<8x8xbf16>
    %c0_24 = arith.constant 0 : index
    %c24 = arith.constant 24 : index
    %76 = vector.load %arg6[%c0_24, %c24] : memref<8x32xbf16, #tpu.memory_space<vmem>>, vector<8x8xbf16>
    tpu.vector_store %arg6[%c0_24, %c24], %75 {strides = array<i32>} : memref<8x32xbf16, #tpu.memory_space<vmem>>, vector<8x8xbf16>,
    %c0_25 = arith.constant 0 : index
    %c0_26 = arith.constant 0 : index
    %77 = vector.load %arg6[%c0_25, %c0_26] : memref<8x32xbf16, #tpu.memory_space<vmem>>, vector<8x32xbf16>
    %c0_27 = arith.constant 0 : index
    %c0_28 = arith.constant 0 : index
    %78 = vector.load %arg3[%c0_27, %c0_28] : memref<32x32xbf16, #tpu.memory_space<vmem>>, vector<32x32xbf16>
    %cst_29 = arith.constant dense<0.000000e+00> : vector<8x32xf32>
    %79 = tpu.matmul %77, %78, %cst_29 {dimension_numbers = #tpu.dot_dimension_numbers<[1], [0], [0], [1], [0, 0, 1, 1], [], []>} : vector<8x32xbf16>, vector<32x32xbf16>, vector<8x32xf32> -> vector<8x32xf32>
    %c0_30 = arith.constant 0 : index
    %c0_31 = arith.constant 0 : index
    %80 = vector.load %arg4[%c0_30, %c0_31] : memref<1x32xf32, #tpu.memory_space<vmem>>, vector<1x32xf32>
    %81 = vector.broadcast %80 : vector<1x32xf32> to vector<8x32xf32>
    %82 = arith.addf %79, %81 : vector<8x32xf32>
    %c0_32 = arith.constant 0 : index
    %c0_33 = arith.constant 0 : index
    %c0_34 = arith.constant 0 : index
    %83 = vector.load %arg5[%c0_32, %c0_33, %c0_34] : memref<1x8x32xf32, #tpu.memory_space<vmem>>, vector<1x8x32xf32>
    %84 = vector.shape_cast %83 : vector<1x8x32xf32> to vector<8x32xf32>
    %85 = vector.shape_cast %82 : vector<8x32xf32> to vector<1x8x32xf32>
    tpu.vector_store %arg5[%c0_32, %c0_33, %c0_34], %85 {strides = array<i32>} : memref<1x8x32xf32, #tpu.memory_space<vmem>>, vector<1x8x32xf32>,
    return
  }
  func.func @transform_0(%arg0: i32) -> (i32, i32, i32) {
    %c0_i32 = arith.constant 0 : i32
    %c0_i32_0 = arith.constant 0 : i32
    %c0_i32_1 = arith.constant 0 : i32
    return %arg0, %c0_i32, %c0_i32_0 : i32, i32, i32
  }
  func.func @transform_1(%arg0: i32) -> (i32, i32) {
    %c0_i32 = arith.constant 0 : i32
    %c0_i32_0 = arith.constant 0 : i32
    %c0_i32_1 = arith.constant 0 : i32
    return %c0_i32, %c0_i32_0 : i32, i32
  }
  func.func @transform_2(%arg0: i32) -> (i32, i32) {
    %c0_i32 = arith.constant 0 : i32
    %c0_i32_0 = arith.constant 0 : i32
    %c0_i32_1 = arith.constant 0 : i32
    return %c0_i32, %c0_i32_0 : i32, i32
  }
  func.func @transform_3(%arg0: i32) -> (i32, i32) {
    %c0_i32 = arith.constant 0 : i32
    %c0_i32_0 = arith.constant 0 : i32
    %c0_i32_1 = arith.constant 0 : i32
    return %c0_i32, %c0_i32_0 : i32, i32
  }
  func.func @transform_4(%arg0: i32) -> (i32, i32, i32) {
    %c0_i32 = arith.constant 0 : i32
    %c0_i32_0 = arith.constant 0 : i32
    %c0_i32_1 = arith.constant 0 : i32
    return %arg0, %c0_i32, %c0_i32_0 : i32, i32, i32
  }
}

</mosaic_0001>

<llo_original>
// kernel: tpu_custom_call.1
$region0: #{tpu_custom_call.1}
  #allocation0 [shape = 'u32[]', space=smem, size = 0x4, offset = 0x4, fixed_abs, tag = 'smem constant byte address 0x4 - core index']
  #allocation1 [shape = 'u32[144,128]{1,0:T(1,128)}', space=vmem, size = 0x12000, scoped, tag = 'internal scratch']
  #allocation2 [shape = 'bf16[8,32]{1,0:T(8,128)(2,1)}', space=vmem, size = 0x800, scoped, tag = 'scratch operand']
  %s0 = inlined_call_operand.hbm [shape: bf16[2,8,32], index: 0, kind: input, shape index: {}]
  %s1 = inlined_call_operand.hbm [shape: bf16[32,96], index: 1, kind: input, shape index: {}]
  %s2 = inlined_call_operand.hbm [shape: bf16[32,32], index: 2, kind: input, shape index: {}]
  %s3 = inlined_call_operand.vmem [shape: f32[1,32], index: 3, kind: input, shape index: {}]
  %s4 = inlined_call_operand.hbm [shape: f32[2,8,32], index: 4, kind: output, shape index: {}]
  %s5 = sld [smem:[#allocation0]]
  $region61: #{tpu_custom_call.1} parent=0
    _
  %s7 = ssub.s32 1, %s5
  %s8 = scalar_select 0, %s7, %s5
  $region1: #{tpu_custom_call.1} parent=0
    #allocation3 [shape = 'u8[4096]{0}', space=vmem, size = 0x1000, scoped, tag = 'input window, operand 0']
    #allocation4 [shape = 's32[2]{0}', space=sflag, size = 0x8, scoped, tag = 'scoped memory for tpu_custom_call.1']
    #allocation5 [shape = 's32[2]{0}', space=sflag, size = 0x8, scoped, tag = 'scoped memory for tpu_custom_call.1']
    #allocation6 [shape = 'u8[8192]{0}', space=vmem, size = 0x2000, scoped, tag = 'input window, operand 1, single buffered']
    #allocation7 [shape = 's32[1]{0}', space=sflag, size = 0x4, scoped, tag = 'scoped memory for tpu_custom_call.1']
    #allocation8 [shape = 'u8[8192]{0}', space=vmem, size = 0x2000, scoped, tag = 'input window, operand 2, single buffered']
    #allocation9 [shape = 'u8[8192]{0}', space=vmem, size = 0x2000, scoped, tag = 'output window, operand 0']
    %9 = vsyncpa [#allocation4], 0
    %s10 = scalar_lea.sflag [#allocation4], 1
    %11 = vsyncpa %s10, 0
    %12 = vsyncpa [#allocation7], 0
    %13 = vsyncpa [#allocation5], 0
    %s14 = scalar_lea.sflag [#allocation5], 1
    %15 = vsyncpa %s14, 0
    loop: start=0, step=1, limit=4
    $region2: #{tpu_custom_call.1} parent=1 // loop_pre_header
      _
    $region3: #{tpu_custom_call.1} parent=1 // loop_header
      %s17 = sphi 0, %s21
      %p18 = scmp.ge.s32.totalorder %s17, 4
      %s27 = sphi 0, %s29
      %s30 = sphi 0, %s27
      %s31 = sphi 0, %s30
      %s47 = sphi 0, %s31
      %s51 = sphi 0, %s51
      %s53 = sphi 0, %s51
      %s54 = sphi 0, %s53
      %s68 = sphi 0, %s54
      %s72 = sphi 0, %s72
      %s74 = sphi 0, %s72
      %s75 = sphi 0, %s74
      %s89 = sphi 0, %s75
      %s93 = sphi 0, %s93
      %s95 = sphi 0, %s93
      %s96 = sphi 0, %s95
      %s110 = sphi 0, %s96
      %s116 = sphi 0, %s118
      %s119 = sphi 0, %s116
      %s120 = sphi 0, %s119
      %s136 = sphi 0, %s120
    $region4: #{tpu_custom_call.1} parent=1 // loop_header_branch
      %20 = sbr.rel (%p18) target = $region8
    $region5: #{tpu_custom_call.1} parent=1 // loop_body
      %s22 = ssub.s32 %s17, 1
      %s23 = ssub.s32 %s17, 2
      %s24 = sadd.s32 %s17, 1
      %s25 = ssub.s32 %s17, %s24
      %p26 = scmp.eq.s32.totalorder %s25, 0
      %s28 = sadd.s32 %s27, 1
      %s29 = scalar_select %p26, %s27, %s28
      %p32 = pneg %p26
      %p33 = scmp.eq.s32.totalorder %s17, 1
      %p34 = por %p32, %p33
      %p35 = scmp.ne.s32.totalorder %s27, %s30
      %p36 = scmp.eq.s32.totalorder %s17, 0
      %p37 = por %p35, %p36
      %p38 = scmp.ne.s32.totalorder %s27, %s30
      %p39 = scmp.eq.s32.totalorder %s22, 1
      %p40 = por %p38, %p39
      %p41 = scmp.ne.s32.totalorder %s30, %s31
      %p42 = scmp.eq.s32.totalorder %s22, 0
      %p43 = por %p41, %p42
      %p44 = scmp.ne.s32.totalorder %s30, %s31
      %p45 = scmp.eq.s32.totalorder %s23, 1
      %p46 = por %p44, %p45
      %p48 = scmp.ne.s32.totalorder %s31, %s47
      %p49 = scmp.eq.s32.totalorder %s23, 0
      %p50 = por %p48, %p49
      %s52 = sadd.s32 %s51, 1
      %p55 = scmp.eq.s32.totalorder %s17, 1
      %p56 = scmp.ne.s32.totalorder %s51, %s53
      %p57 = scmp.eq.s32.totalorder %s17, 0
      %p58 = por %p56, %p57
      %p59 = scmp.ne.s32.totalorder %s51, %s53
      %p60 = scmp.eq.s32.totalorder %s22, 1
      %p61 = por %p59, %p60
      %p62 = scmp.ne.s32.totalorder %s53, %s54
      %p63 = scmp.eq.s32.totalorder %s22, 0
      %p64 = por %p62, %p63
      %p65 = scmp.ne.s32.totalorder %s53, %s54
      %p66 = scmp.eq.s32.totalorder %s23, 1
      %p67 = por %p65, %p66
      %p69 = scmp.ne.s32.totalorder %s54, %s68
      %p70 = scmp.eq.s32.totalorder %s23, 0
      %p71 = por %p69, %p70
      %s73 = sadd.s32 %s72, 1
      %p76 = scmp.eq.s32.totalorder %s17, 1
      %p77 = scmp.ne.s32.totalorder %s72, %s74
      %p78 = scmp.eq.s32.totalorder %s17, 0
      %p79 = por %p77, %p78
      %p80 = scmp.ne.s32.totalorder %s72, %s74
      %p81 = scmp.eq.s32.totalorder %s22, 1
      %p82 = por %p80, %p81
      %p83 = scmp.ne.s32.totalorder %s74, %s75
      %p84 = scmp.eq.s32.totalorder %s22, 0
      %p85 = por %p83, %p84
      %p86 = scmp.ne.s32.totalorder %s74, %s75
      %p87 = scmp.eq.s32.totalorder %s23, 1
      %p88 = por %p86, %p87
      %p90 = scmp.ne.s32.totalorder %s75, %s89
      %p91 = scmp.eq.s32.totalorder %s23, 0
      %p92 = por %p90, %p91
      %s94 = sadd.s32 %s93, 1
      %p97 = scmp.eq.s32.totalorder %s17, 1
      %p98 = scmp.ne.s32.totalorder %s93, %s95
      %p99 = scmp.eq.s32.totalorder %s17, 0
      %p100 = por %p98, %p99
      %p101 = scmp.ne.s32.totalorder %s93, %s95
      %p102 = scmp.eq.s32.totalorder %s22, 1
      %p103 = por %p101, %p102
      %p104 = scmp.ne.s32.totalorder %s95, %s96
      %p105 = scmp.eq.s32.totalorder %s22, 0
      %p106 = por %p104, %p105
      %p107 = scmp.ne.s32.totalorder %s95, %s96
      %p108 = scmp.eq.s32.totalorder %s23, 1
      %p109 = por %p107, %p108
      %p111 = scmp.ne.s32.totalorder %s96, %s110
      %p112 = scmp.eq.s32.totalorder %s23, 0
      %p113 = por %p111, %p112
      %s114 = ssub.s32 %s17, %s24
      %p115 = scmp.eq.s32.totalorder %s114, 0
      %s117 = sadd.s32 %s116, 1
      %s118 = scalar_select %p115, %s116, %s117
      %p121 = pneg %p115
      %p122 = scmp.eq.s32.totalorder %s17, 1
      %p123 = por %p121, %p122
      %p124 = scmp.ne.s32.totalorder %s116, %s119
      %p125 = scmp.eq.s32.totalorder %s17, 0
      %p126 = por %p124, %p125
      %p127 = scmp.ne.s32.totalorder %s116, %s119
      %p128 = scmp.eq.s32.totalorder %s22, 1
      %p129 = por %p127, %p128
      %p130 = scmp.ne.s32.totalorder %s119, %s120
      %p131 = scmp.eq.s32.totalorder %s22, 0
      %p132 = por %p130, %p131
      %p133 = scmp.ne.s32.totalorder %s119, %s120
      %p134 = scmp.eq.s32.totalorder %s23, 1
      %p135 = por %p133, %p134
      %p137 = scmp.ne.s32.totalorder %s120, %s136
      %p138 = scmp.eq.s32.totalorder %s23, 0
      %p139 = por %p137, %p138
      %p140 = scmp.le.s32.totalorder 1, %s17
      %p141 = scmp.lt.s32.totalorder %s17, 3
      %p142 = pnand %p140, %p141
      %p143 = pneg %p142
      // Predicated region
      $region9: #{tpu_custom_call.1} parent=5 // pred_check
        _
      $region10: #{tpu_custom_call.1} parent=5 // pred_check_branch
        %145 = sbr.rel (%p142) target = $region12
      $region11: #{tpu_custom_call.1} parent=5 // pred_region
        %s146 = ssub.s32 %s17, 1
        // Predicated region
        $region13: #{tpu_custom_call.1} parent=11 // pred_check
          %p147 = pneg %p64
        $region14: #{tpu_custom_call.1} parent=11 // pred_check_branch
          %149 = sbr.rel (%p147) target = $region16
        $region15: #{tpu_custom_call.1} parent=11 // pred_region
          %s151 = ssub.s32 256, 256
          %152 = vsyncadd [#allocation7], %s151
          %s153 = sshll.u32 [#allocation6], 4
          %s154 = int_to_ptr.vmem [resolvable:$true] %s153
          %159 = dma.hbm_to_vmem [thread:$0]  %s1, 256, %s154, [#allocation7], 64, 64, 4
        $region16: #{tpu_custom_call.1} parent=11 // pred_fallthru
          _
        // Predicated region
        $region17: #{tpu_custom_call.1} parent=11 // pred_check
          %p160 = pneg %p85
        $region18: #{tpu_custom_call.1} parent=11 // pred_check_branch
          %162 = sbr.rel (%p160) target = $region20
        $region19: #{tpu_custom_call.1} parent=11 // pred_region
          %s164 = ssub.s32 256, 256
          %165 = vsyncadd [#allocation7], %s164
          %s166 = sshll.u32 [#allocation8], 4
          %s167 = int_to_ptr.vmem [resolvable:$true] %s166
          %172 = dma.hbm_to_vmem [thread:$0]  %s2, 256, %s167, [#allocation7], 64, 64, 4
        $region20: #{tpu_custom_call.1} parent=11 // pred_fallthru
          _
        // Predicated region
        $region21: #{tpu_custom_call.1} parent=11 // pred_check
          %p173 = pneg %p106
        $region22: #{tpu_custom_call.1} parent=11 // pred_check_branch
          %175 = sbr.rel (%p173) target = $region24
        $region23: #{tpu_custom_call.1} parent=11 // pred_region
          _
        $region24: #{tpu_custom_call.1} parent=11 // pred_fallthru
          _
      $region12: #{tpu_custom_call.1} parent=5 // pred_fallthru
        _
      %p176 = scmp.lt.s32.totalorder %s17, 2
      // Predicated region
      $region25: #{tpu_custom_call.1} parent=5 // pred_check
        %p177 = pneg %p176
      $region26: #{tpu_custom_call.1} parent=5 // pred_check_branch
        %179 = sbr.rel (%p177) target = $region28
      $region27: #{tpu_custom_call.1} parent=5 // pred_region
        // Predicated region
        $region29: #{tpu_custom_call.1} parent=27 // pred_check
          %p180 = pneg %p37
        $region30: #{tpu_custom_call.1} parent=27 // pred_check_branch
          %182 = sbr.rel (%p180) target = $region32
        $region31: #{tpu_custom_call.1} parent=27 // pred_region
          %s183 = sand.u32 %s27, 1
          %s184 = scalar_lea.sflag [#allocation4], %s183
          %s185 = sand.u32 %s27, 1
          %s186 = smul.addr %s185, 4
          %s187 = scalar_lea.vmem [#allocation3], %s186
          %s189 = ssub.s32 64, 64
          %190 = vsyncadd %s184, %s189
          %s191 = smul.addr %s17, 64
          %s192 = scalar_lea.hbm %s0, %s191
          %s194 = sshll.u32 %s187, 4
          %s195 = int_to_ptr.vmem [resolvable:$true] %s194
          %197 = dma.hbm_to_vmem [thread:$0]  %s192, 64, %s195, %s184
        $region32: #{tpu_custom_call.1} parent=27 // pred_fallthru
          _
      $region28: #{tpu_custom_call.1} parent=5 // pred_fallthru
        _
      %p198 = scmp.le.s32.totalorder 1, %s17
      %p199 = scmp.lt.s32.totalorder %s17, 3
      %p200 = pnand %p198, %p199
      %p201 = pneg %p200
      // Predicated region
      $region33: #{tpu_custom_call.1} parent=5 // pred_check
        _
      $region34: #{tpu_custom_call.1} parent=5 // pred_check_branch
        %203 = sbr.rel (%p200) target = $region36
      $region35: #{tpu_custom_call.1} parent=5 // pred_region
        %s204 = ssub.s32 %s17, 1
        %s205 = sand.u32 %s30, 1
        %s206 = scalar_lea.sflag [#allocation4], %s205
        %s207 = sand.u32 %s30, 1
        %s208 = smul.addr %s207, 4
        %s209 = scalar_lea.vmem [#allocation3], %s208
        // Predicated region
        $region37: #{tpu_custom_call.1} parent=35 // pred_check
          %p210 = pneg %p43
        $region38: #{tpu_custom_call.1} parent=35 // pred_check_branch
          %212 = sbr.rel (%p210) target = $region40
        $region39: #{tpu_custom_call.1} parent=35 // pred_region
          %213 = dma.done %s206, 64
        $region40: #{tpu_custom_call.1} parent=35 // pred_fallthru
          _
        // Predicated region
        $region41: #{tpu_custom_call.1} parent=35 // pred_check
          %p214 = pneg %p64
        $region42: #{tpu_custom_call.1} parent=35 // pred_check_branch
          %216 = sbr.rel (%p214) target = $region44
        $region43: #{tpu_custom_call.1} parent=35 // pred_region
          %217 = dma.done [#allocation7], 256
        $region44: #{tpu_custom_call.1} parent=35 // pred_fallthru
          _
        // Predicated region
        $region45: #{tpu_custom_call.1} parent=35 // pred_check
          %p218 = pneg %p85
        $region46: #{tpu_custom_call.1} parent=35 // pred_check_branch
          %220 = sbr.rel (%p218) target = $region48
        $region47: #{tpu_custom_call.1} parent=35 // pred_region
          %221 = dma.done [#allocation7], 256
        $region48: #{tpu_custom_call.1} parent=35 // pred_fallthru
          _
        %s222 = sand.u32 %s30, 1
        %s223 = scalar_lea.sflag [#allocation4], %s222
        %s224 = sand.u32 %s30, 1
        %s225 = smul.addr %s224, 4
        %s226 = scalar_lea.vmem [#allocation3], %s225
        %p227 = pneg %p43
        %p228 = pneg %p40
        %p229 = pneg %p64
        %p230 = pneg %p61
        %p231 = pneg %p85
        %p232 = pneg %p82
        %p233 = pneg %p106
        %p234 = pneg %p103
        %p235 = pneg %p132
        %p236 = pneg %p129
        %s237 = sand.u32 %s119, 1
        %s238 = scalar_lea.sflag [#allocation5], %s237
        %s239 = sand.u32 %s119, 1
        %s240 = smul.addr %s239, 8
        %s241 = scalar_lea.vmem [#allocation9], %s240
        %v243 = vld [vmem:[%s209] sm:$0xf]
        %v244 = vld [vmem:[#allocation6] sm:$0xf]
        %v245 = vld [vmem:[#allocation6 + $0x4] sm:$0xf]
        %v246 = vld [vmem:[#allocation6 + $0x8] sm:$0xf]
        %v247 = vld [vmem:[#allocation6 + $0xc] sm:$0xf]
        %v252 = vunpack.c.l.b16 %v244
        %v253 = vunpack.c.l.b16 %v245
        %v254 = vunpack.c.l.b16 %v246
        %v255 = vunpack.c.l.b16 %v247
        %v256 = vpack.c.b16 %v253, %v252
        %v257 = vpack.c.b16 %v255, %v254
        %vm260 = vcmask 261120
        %v262 = vsel %vm260, %v243, 0
        %264 = vmatprep.subr.bf16.mxu0 0
        %265 = vmatpush1.bf16.msra.mxu0 %v256
        %266 = vmatprep.subr.bf16.mxu0 0
        %267 = vmatpush1.bf16.msra.mxu0 %v257
        %268 = vmatprep.subr.bf16.mxu0 0
        %269 = vmatpush1.bf16.msra.mxu0 0
        %270 = vmatprep.subr.bf16.mxu0 0
        %271 = vmatpush1.bf16.msra.mxu0 0
        %272 = vmatprep.subr.bf16.mxu0 0
        %273 = vmatpush1.bf16.msra.mxu0 0
        %274 = vmatprep.subr.bf16.mxu0 0
        %275 = vmatpush1.bf16.msra.mxu0 0
        %276 = vmatprep.subr.bf16.mxu0 0
        %277 = vmatpush1.bf16.msra.mxu0 0
        %278 = vmatprep.subr.bf16.mxu0 0
        %279 = vmatpush1.bf16.msra.mxu0 0
        %280 = vmatprep.subr.bf16.mxu0 0
        %281 = vmatpush1.bf16.msra.mxu0 0
        %282 = vmatprep.subr.bf16.mxu0 0
        %283 = vmatpush1.bf16.msra.mxu0 0
        %284 = vmatprep.subr.bf16.mxu0 0
        %285 = vmatpush1.bf16.msra.mxu0 0
        %286 = vmatprep.subr.bf16.mxu0 0
        %287 = vmatpush1.bf16.msra.mxu0 0
        %288 = vmatprep.subr.bf16.mxu0 0
        %289 = vmatpush1.bf16.msra.mxu0 0
        %290 = vmatprep.subr.bf16.mxu0 0
        %291 = vmatpush1.bf16.msra.mxu0 0
        %292 = vmatprep.subr.bf16.mxu0 0
        %293 = vmatpush1.bf16.msra.mxu0 0
        %294 = vmatprep.subr.bf16.mxu0 0
        %295 = vmatpush1.bf16.msra.mxu0 0
        %296 = vmatprep.mubr.bf16.mxu0 0
        %297 = vmatmul.mubr.bf16.gmra.mrb[0].mxu0 %v262
        %v298 = vpop.f32.mrb[0].mxu0
        %v299 = vadd.f32 0.0, %v298
        %v300 = vpop.f32.mrb[0].mxu0
        %v301 = vpop.f32.mrb[0].mxu0
        %v302 = vpop.f32.mrb[0].mxu0
        %303 = vdwg.mxu0
        %v304 = vpack.c.bf16 %v299, %v299
        %306 = vrot.lane.b32.xlu0 %v304, 96
        %v307 = vpop.permute.xlu0 %306
        %vm308 = vcmask 64512
        %v310 = vsel %vm308, %v304, 0
        %v313 = vsel %vm308, %v307, 0
        %315 = vmatprep.subr.bf16.mxu0 0
        %316 = vmatpush1.bf16.xpose.msra.mxu0 %v313
        %317 = vmatprep.subr.bf16.mxu0 0
        %318 = vmatpush1.bf16.xpose.msra.mxu0 0
        %319 = vmatprep.subr.bf16.mxu0 0
        %320 = vmatpush1.bf16.xpose.msra.mxu0 0
        %321 = vmatprep.subr.bf16.mxu0 0
        %322 = vmatpush1.bf16.xpose.msra.mxu0 0
        %323 = vmatprep.subr.bf16.mxu0 0
        %324 = vmatpush1.bf16.xpose.msra.mxu0 0
        %325 = vmatprep.subr.bf16.mxu0 0
        %326 = vmatpush1.bf16.xpose.msra.mxu0 0
        %327 = vmatprep.subr.bf16.mxu0 0
        %328 = vmatpush1.bf16.xpose.msra.mxu0 0
        %329 = vmatprep.subr.bf16.mxu0 0
        %330 = vmatpush1.bf16.xpose.msra.mxu0 0
        %331 = vmatprep.subr.bf16.mxu0 0
        %332 = vmatpush1.bf16.xpose.msra.mxu0 0
        %333 = vmatprep.subr.bf16.mxu0 0
        %334 = vmatpush1.bf16.xpose.msra.mxu0 0
        %335 = vmatprep.subr.bf16.mxu0 0
        %336 = vmatpush1.bf16.xpose.msra.mxu0 0
        %337 = vmatprep.subr.bf16.mxu0 0
        %338 = vmatpush1.bf16.xpose.msra.mxu0 0
        %339 = vmatprep.subr.bf16.mxu0 0
        %340 = vmatpush1.bf16.xpose.msra.mxu0 0
        %341 = vmatprep.subr.bf16.mxu0 0
        %342 = vmatpush1.bf16.xpose.msra.mxu0 0
        %343 = vmatprep.subr.bf16.mxu0 0
        %344 = vmatpush1.bf16.xpose.msra.mxu0 0
        %345 = vmatprep.subr.bf16.mxu0 0
        %346 = vmatpush1.bf16.xpose.msra.mxu0 0
        %347 = vmatprep.mubr.bf16.mxu0 0
        %348 = vmatmul.mubr.bf16.gmra.mrb[0].mxu0 %v310
        %v349 = vpop.f32.mrb[0].mxu0
        %v350 = vadd.f32 0.0, %v349
        %v351 = vpop.f32.mrb[0].mxu0
        %v352 = vpop.f32.mrb[0].mxu0
        %v353 = vpop.f32.mrb[0].mxu0
        %354 = vdwg.mxu0
        %v355 = vsel %vm308, %v350, -inf
        %356 = vmax.xlane.f32.xlu0 %v355
        %v357 = vpop.xlane.xlu0 %356
        %v358 = vsub.f32 %v350, %v357
        %v359 = vmul.f32 %v358, 1.442695
        %v360 = vpow.pop %v359
        %v361 = vsel %vm308, %v360, 0.0
        %362 = vadd.xlane.f32.xlu0 %v361
        %v363 = vpop.xlane.xlu0 %362
        %v364 = vrcp.pop %v363
        %v365 = vpack.c.bf16 %v360, %v360
        %366 = vrot.lane.b32.xlu0 %v304, 64
        %v367 = vpop.permute.xlu0 %366
        %v369 = vsel %vm308, %v365, 0
        %vm371 = vcmask 1043456
        %v373 = vsel %vm371, %v367, 0
        %375 = vmatprep.subr.bf16.mxu0 0
        %376 = vmatpush1.bf16.msra.mxu0 %v373
        %377 = vmatprep.subr.bf16.mxu0 0
        %378 = vmatpush1.bf16.msra.mxu0 0
        %379 = vmatprep.subr.bf16.mxu0 0
        %380 = vmatpush1.bf16.msra.mxu0 0
        %381 = vmatprep.subr.bf16.mxu0 0
        %382 = vmatpush1.bf16.msra.mxu0 0
        %383 = vmatprep.subr.bf16.mxu0 0
        %384 = vmatpush1.bf16.msra.mxu0 0
        %385 = vmatprep.subr.bf16.mxu0 0
        %386 = vmatpush1.bf16.msra.mxu0 0
        %387 = vmatprep.subr.bf16.mxu0 0
        %388 = vmatpush1.bf16.msra.mxu0 0
        %389 = vmatprep.subr.bf16.mxu0 0
        %390 = vmatpush1.bf16.msra.mxu0 0
        %391 = vmatprep.subr.bf16.mxu0 0
        %392 = vmatpush1.bf16.msra.mxu0 0
        %393 = vmatprep.subr.bf16.mxu0 0
        %394 = vmatpush1.bf16.msra.mxu0 0
        %395 = vmatprep.subr.bf16.mxu0 0
        %396 = vmatpush1.bf16.msra.mxu0 0
        %397 = vmatprep.subr.bf16.mxu0 0
        %398 = vmatpush1.bf16.msra.mxu0 0
        %399 = vmatprep.subr.bf16.mxu0 0
        %400 = vmatpush1.bf16.msra.mxu0 0
        %401 = vmatprep.subr.bf16.mxu0 0
        %402 = vmatpush1.bf16.msra.mxu0 0
        %403 = vmatprep.subr.bf16.mxu0 0
        %404 = vmatpush1.bf16.msra.mxu0 0
        %405 = vmatprep.subr.bf16.mxu0 0
        %406 = vmatpush1.bf16.msra.mxu0 0
        %407 = vmatprep.mubr.bf16.mxu0 0
        %408 = vmatmul.mubr.bf16.gmra.mrb[0].mxu0 %v369
        %v409 = vpop.f32.mrb[0].mxu0
        %v410 = vadd.f32 0.0, %v409
        %v411 = vpop.f32.mrb[0].mxu0
        %v412 = vpop.f32.mrb[0].mxu0
        %v413 = vpop.f32.mrb[0].mxu0
        %414 = vdwg.mxu0
        %v415 = vmul.f32 %v410, %v364
        %v416 = vpack.c.bf16 %v415, %v415
        %vm417 = vcmask 60416
        %418 = vst.msk [vmem:[#allocation2] sm:$0xf] %vm417, %v416
        %419 = vrot.lane.b32.xlu0 %v304, 120
        %v420 = vpop.permute.xlu0 %419
        %421 = vrot.lane.b32.xlu0 %v304, 88
        %v422 = vpop.permute.xlu0 %421
        %v424 = vsel %vm308, %v420, 0
        %v427 = vsel %vm308, %v422, 0
        %429 = vmatprep.subr.bf16.mxu0 0
        %430 = vmatpush1.bf16.xpose.msra.mxu0 %v427
        %431 = vmatprep.subr.bf16.mxu0 0
        %432 = vmatpush1.bf16.xpose.msra.mxu0 0
        %433 = vmatprep.subr.bf16.mxu0 0
        %434 = vmatpush1.bf16.xpose.msra.mxu0 0
        %435 = vmatprep.subr.bf16.mxu0 0
        %436 = vmatpush1.bf16.xpose.msra.mxu0 0
        %437 = vmatprep.subr.bf16.mxu0 0
        %438 = vmatpush1.bf16.xpose.msra.mxu0 0
        %439 = vmatprep.subr.bf16.mxu0 0
        %440 = vmatpush1.bf16.xpose.msra.mxu0 0
        %441 = vmatprep.subr.bf16.mxu0 0
        %442 = vmatpush1.bf16.xpose.msra.mxu0 0
        %443 = vmatprep.subr.bf16.mxu0 0
        %444 = vmatpush1.bf16.xpose.msra.mxu0 0
        %445 = vmatprep.subr.bf16.mxu0 0
        %446 = vmatpush1.bf16.xpose.msra.mxu0 0
        %447 = vmatprep.subr.bf16.mxu0 0
        %448 = vmatpush1.bf16.xpose.msra.mxu0 0
        %449 = vmatprep.subr.bf16.mxu0 0
        %450 = vmatpush1.bf16.xpose.msra.mxu0 0
        %451 = vmatprep.subr.bf16.mxu0 0
        %452 = vmatpush1.bf16.xpose.msra.mxu0 0
        %453 = vmatprep.subr.bf16.mxu0 0
        %454 = vmatpush1.bf16.xpose.msra.mxu0 0
        %455 = vmatprep.subr.bf16.mxu0 0
        %456 = vmatpush1.bf16.xpose.msra.mxu0 0
        %457 = vmatprep.subr.bf16.mxu0 0
        %458 = vmatpush1.bf16.xpose.msra.mxu0 0
        %459 = vmatprep.subr.bf16.mxu0 0
        %460 = vmatpush1.bf16.xpose.msra.mxu0 0
        %461 = vmatprep.mubr.bf16.mxu0 0
        %462 = vmatmul.mubr.bf16.gmra.mrb[0].mxu0 %v424
        %v463 = vpop.f32.mrb[0].mxu0
        %v464 = vadd.f32 0.0, %v463
        %v465 = vpop.f32.mrb[0].mxu0
        %v466 = vpop.f32.mrb[0].mxu0
        %v467 = vpop.f32.mrb[0].mxu0
        %468 = vdwg.mxu0
        %v469 = vsel %vm308, %v464, -inf
        %470 = vmax.xlane.f32.xlu0 %v469
        %v471 = vpop.xlane.xlu0 %470
        %v472 = vsub.f32 %v464, %v471
        %v473 = vmul.f32 %v472, 1.442695
        %v474 = vpow.pop %v473
        %v475 = vsel %vm308, %v474, 0.0
        %476 = vadd.xlane.f32.xlu0 %v475
        %v477 = vpop.xlane.xlu0 %476
        %v478 = vrcp.pop %v477
        %v479 = vpack.c.bf16 %v474, %v474
        %480 = vrot.lane.b32.xlu0 %v304, 56
        %v481 = vpop.permute.xlu0 %480
        %v483 = vsel %vm308, %v479, 0
        %v486 = vsel %vm371, %v481, 0
        %488 = vmatprep.subr.bf16.mxu0 0
        %489 = vmatpush1.bf16.msra.mxu0 %v486
        %490 = vmatprep.subr.bf16.mxu0 0
        %491 = vmatpush1.bf16.msra.mxu0 0
        %492 = vmatprep.subr.bf16.mxu0 0
        %493 = vmatpush1.bf16.msra.mxu0 0
        %494 = vmatprep.subr.bf16.mxu0 0
        %495 = vmatpush1.bf16.msra.mxu0 0
        %496 = vmatprep.subr.bf16.mxu0 0
        %497 = vmatpush1.bf16.msra.mxu0 0
        %498 = vmatprep.subr.bf16.mxu0 0
        %499 = vmatpush1.bf16.msra.mxu0 0
        %500 = vmatprep.subr.bf16.mxu0 0
        %501 = vmatpush1.bf16.msra.mxu0 0
        %502 = vmatprep.subr.bf16.mxu0 0
        %503 = vmatpush1.bf16.msra.mxu0 0
        %504 = vmatprep.subr.bf16.mxu0 0
        %505 = vmatpush1.bf16.msra.mxu0 0
        %506 = vmatprep.subr.bf16.mxu0 0
        %507 = vmatpush1.bf16.msra.mxu0 0
        %508 = vmatprep.subr.bf16.mxu0 0
        %509 = vmatpush1.bf16.msra.mxu0 0
        %510 = vmatprep.subr.bf16.mxu0 0
        %511 = vmatpush1.bf16.msra.mxu0 0
        %512 = vmatprep.subr.bf16.mxu0 0
        %513 = vmatpush1.bf16.msra.mxu0 0
        %514 = vmatprep.subr.bf16.mxu0 0
        %515 = vmatpush1.bf16.msra.mxu0 0
        %516 = vmatprep.subr.bf16.mxu0 0
        %517 = vmatpush1.bf16.msra.mxu0 0
        %518 = vmatprep.subr.bf16.mxu0 0
        %519 = vmatpush1.bf16.msra.mxu0 0
        %520 = vmatprep.mubr.bf16.mxu0 0
        %521 = vmatmul.mubr.bf16.gmra.mrb[0].mxu0 %v483
        %v522 = vpop.f32.mrb[0].mxu0
        %v523 = vadd.f32 0.0, %v522
        %v524 = vpop.f32.mrb[0].mxu0
        %v525 = vpop.f32.mrb[0].mxu0
        %v526 = vpop.f32.mrb[0].mxu0
        %527 = vdwg.mxu0
        %v528 = vmul.f32 %v523, %v478
        %v529 = vpack.c.bf16 %v528, %v528
        %v531 = vunpack.c.l.b16 %v529
        %v532 = vpack.c.b16 %v531, %v531
        %533 = vrot.lane.b32.xlu0 %v532, 8
        %v534 = vpop.permute.xlu0 %533
        %vm536 = vcmask 126016
        %537 = vst.msk [vmem:[#allocation2] sm:$0xf] %vm536, %v534
        %538 = vrot.lane.b32.xlu0 %v304, 112
        %v539 = vpop.permute.xlu0 %538
        %540 = vrot.lane.b32.xlu0 %v304, 80
        %v541 = vpop.permute.xlu0 %540
        %v543 = vsel %vm308, %v539, 0
        %v546 = vsel %vm308, %v541, 0
        %548 = vmatprep.subr.bf16.mxu0 0
        %549 = vmatpush1.bf16.xpose.msra.mxu0 %v546
        %550 = vmatprep.subr.bf16.mxu0 0
        %551 = vmatpush1.bf16.xpose.msra.mxu0 0
        %552 = vmatprep.subr.bf16.mxu0 0
        %553 = vmatpush1.bf16.xpose.msra.mxu0 0
        %554 = vmatprep.subr.bf16.mxu0 0
        %555 = vmatpush1.bf16.xpose.msra.mxu0 0
        %556 = vmatprep.subr.bf16.mxu0 0
        %557 = vmatpush1.bf16.xpose.msra.mxu0 0
        %558 = vmatprep.subr.bf16.mxu0 0
        %559 = vmatpush1.bf16.xpose.msra.mxu0 0
        %560 = vmatprep.subr.bf16.mxu0 0
        %561 = vmatpush1.bf16.xpose.msra.mxu0 0
        %562 = vmatprep.subr.bf16.mxu0 0
        %563 = vmatpush1.bf16.xpose.msra.mxu0 0
        %564 = vmatprep.subr.bf16.mxu0 0
        %565 = vmatpush1.bf16.xpose.msra.mxu0 0
        %566 = vmatprep.subr.bf16.mxu0 0
        %567 = vmatpush1.bf16.xpose.msra.mxu0 0
        %568 = vmatprep.subr.bf16.mxu0 0
        %569 = vmatpush1.bf16.xpose.msra.mxu0 0
        %570 = vmatprep.subr.bf16.mxu0 0
        %571 = vmatpush1.bf16.xpose.msra.mxu0 0
        %572 = vmatprep.subr.bf16.mxu0 0
        %573 = vmatpush1.bf16.xpose.msra.mxu0 0
        %574 = vmatprep.subr.bf16.mxu0 0
        %575 = vmatpush1.bf16.xpose.msra.mxu0 0
        %576 = vmatprep.subr.bf16.mxu0 0
        %577 = vmatpush1.bf16.xpose.msra.mxu0 0
        %578 = vmatprep.subr.bf16.mxu0 0
        %579 = vmatpush1.bf16.xpose.msra.mxu0 0
        %580 = vmatprep.mubr.bf16.mxu0 0
        %581 = vmatmul.mubr.bf16.gmra.mrb[0].mxu0 %v543
        %v582 = vpop.f32.mrb[0].mxu0
        %v583 = vadd.f32 0.0, %v582
        %v584 = vpop.f32.mrb[0].mxu0
        %v585 = vpop.f32.mrb[0].mxu0
        %v586 = vpop.f32.mrb[0].mxu0
        %587 = vdwg.mxu0
        %v588 = vsel %vm308, %v583, -inf
        %589 = vmax.xlane.f32.xlu0 %v588
        %v590 = vpop.xlane.xlu0 %589
        %v591 = vsub.f32 %v583, %v590
        %v592 = vmul.f32 %v591, 1.442695
        %v593 = vpow.pop %v592
        %v594 = vsel %vm308, %v593, 0.0
        %595 = vadd.xlane.f32.xlu0 %v594
        %v596 = vpop.xlane.xlu0 %595
        %v597 = vrcp.pop %v596
        %v598 = vpack.c.bf16 %v593, %v593
        %599 = vrot.lane.b32.xlu0 %v304, 48
        %v600 = vpop.permute.xlu0 %599
        %v602 = vsel %vm308, %v598, 0
        %v605 = vsel %vm371, %v600, 0
        %607 = vmatprep.subr.bf16.mxu0 0
        %608 = vmatpush1.bf16.msra.mxu0 %v605
        %609 = vmatprep.subr.bf16.mxu0 0
        %610 = vmatpush1.bf16.msra.mxu0 0
        %611 = vmatprep.subr.bf16.mxu0 0
        %612 = vmatpush1.bf16.msra.mxu0 0
        %613 = vmatprep.subr.bf16.mxu0 0
        %614 = vmatpush1.bf16.msra.mxu0 0
        %615 = vmatprep.subr.bf16.mxu0 0
        %616 = vmatpush1.bf16.msra.mxu0 0
        %617 = vmatprep.subr.bf16.mxu0 0
        %618 = vmatpush1.bf16.msra.mxu0 0
        %619 = vmatprep.subr.bf16.mxu0 0
        %620 = vmatpush1.bf16.msra.mxu0 0
        %621 = vmatprep.subr.bf16.mxu0 0
        %622 = vmatpush1.bf16.msra.mxu0 0
        %623 = vmatprep.subr.bf16.mxu0 0
        %624 = vmatpush1.bf16.msra.mxu0 0
        %625 = vmatprep.subr.bf16.mxu0 0
        %626 = vmatpush1.bf16.msra.mxu0 0
        %627 = vmatprep.subr.bf16.mxu0 0
        %628 = vmatpush1.bf16.msra.mxu0 0
        %629 = vmatprep.subr.bf16.mxu0 0
        %630 = vmatpush1.bf16.msra.mxu0 0
        %631 = vmatprep.subr.bf16.mxu0 0
        %632 = vmatpush1.bf16.msra.mxu0 0
        %633 = vmatprep.subr.bf16.mxu0 0
        %634 = vmatpush1.bf16.msra.mxu0 0
        %635 = vmatprep.subr.bf16.mxu0 0
        %636 = vmatpush1.bf16.msra.mxu0 0
        %637 = vmatprep.subr.bf16.mxu0 0
        %638 = vmatpush1.bf16.msra.mxu0 0
        %639 = vmatprep.mubr.bf16.mxu0 0
        %640 = vmatmul.mubr.bf16.gmra.mrb[0].mxu0 %v602
        %v641 = vpop.f32.mrb[0].mxu0
        %v642 = vadd.f32 0.0, %v641
        %v643 = vpop.f32.mrb[0].mxu0
        %v644 = vpop.f32.mrb[0].mxu0
        %v645 = vpop.f32.mrb[0].mxu0
        %646 = vdwg.mxu0
        %v647 = vmul.f32 %v642, %v597
        %v648 = vpack.c.bf16 %v647, %v647
        %v650 = vunpack.c.l.b16 %v648
        %v651 = vpack.c.b16 %v650, %v650
        %652 = vrot.lane.b32.xlu0 %v651, 16
        %v653 = vpop.permute.xlu0 %652
        %vm655 = vcmask 191616
        %656 = vst.msk [vmem:[#allocation2] sm:$0xf] %vm655, %v653
        %657 = vrot.lane.b32.xlu0 %v304, 104
        %v658 = vpop.permute.xlu0 %657
        %659 = vrot.lane.b32.xlu0 %v304, 72
        %v660 = vpop.permute.xlu0 %659
        %v662 = vsel %vm308, %v658, 0
        %v665 = vsel %vm308, %v660, 0
        %667 = vmatprep.subr.bf16.mxu0 0
        %668 = vmatpush1.bf16.xpose.msra.mxu0 %v665
        %669 = vmatprep.subr.bf16.mxu0 0
        %670 = vmatpush1.bf16.xpose.msra.mxu0 0
        %671 = vmatprep.subr.bf16.mxu0 0
        %672 = vmatpush1.bf16.xpose.msra.mxu0 0
        %673 = vmatprep.subr.bf16.mxu0 0
        %674 = vmatpush1.bf16.xpose.msra.mxu0 0
        %675 = vmatprep.subr.bf16.mxu0 0
        %676 = vmatpush1.bf16.xpose.msra.mxu0 0
        %677 = vmatprep.subr.bf16.mxu0 0
        %678 = vmatpush1.bf16.xpose.msra.mxu0 0
        %679 = vmatprep.subr.bf16.mxu0 0
        %680 = vmatpush1.bf16.xpose.msra.mxu0 0
        %681 = vmatprep.subr.bf16.mxu0 0
        %682 = vmatpush1.bf16.xpose.msra.mxu0 0
        %683 = vmatprep.subr.bf16.mxu0 0
        %684 = vmatpush1.bf16.xpose.msra.mxu0 0
        %685 = vmatprep.subr.bf16.mxu0 0
        %686 = vmatpush1.bf16.xpose.msra.mxu0 0
        %687 = vmatprep.subr.bf16.mxu0 0
        %688 = vmatpush1.bf16.xpose.msra.mxu0 0
        %689 = vmatprep.subr.bf16.mxu0 0
        %690 = vmatpush1.bf16.xpose.msra.mxu0 0
        %691 = vmatprep.subr.bf16.mxu0 0
        %692 = vmatpush1.bf16.xpose.msra.mxu0 0
        %693 = vmatprep.subr.bf16.mxu0 0
        %694 = vmatpush1.bf16.xpose.msra.mxu0 0
        %695 = vmatprep.subr.bf16.mxu0 0
        %696 = vmatpush1.bf16.xpose.msra.mxu0 0
        %697 = vmatprep.subr.bf16.mxu0 0
        %698 = vmatpush1.bf16.xpose.msra.mxu0 0
        %699 = vmatprep.mubr.bf16.mxu0 0
        %700 = vmatmul.mubr.bf16.gmra.mrb[0].mxu0 %v662
        %v701 = vpop.f32.mrb[0].mxu0
        %v702 = vadd.f32 0.0, %v701
        %v703 = vpop.f32.mrb[0].mxu0
        %v704 = vpop.f32.mrb[0].mxu0
        %v705 = vpop.f32.mrb[0].mxu0
        %706 = vdwg.mxu0
        %v707 = vsel %vm308, %v702, -inf
        %708 = vmax.xlane.f32.xlu0 %v707
        %v709 = vpop.xlane.xlu0 %708
        %v710 = vsub.f32 %v702, %v709
        %v711 = vmul.f32 %v710, 1.442695
        %v712 = vpow.pop %v711
        %v713 = vsel %vm308, %v712, 0.0
        %714 = vadd.xlane.f32.xlu0 %v713
        %v715 = vpop.xlane.xlu0 %714
        %v716 = vrcp.pop %v715
        %v717 = vpack.c.bf16 %v712, %v712
        %718 = vrot.lane.b32.xlu0 %v304, 40
        %v719 = vpop.permute.xlu0 %718
        %v721 = vsel %vm308, %v717, 0
        %v724 = vsel %vm371, %v719, 0
        %726 = vmatprep.subr.bf16.mxu0 0
        %727 = vmatpush1.bf16.msra.mxu0 %v724
        %728 = vmatprep.subr.bf16.mxu0 0
        %729 = vmatpush1.bf16.msra.mxu0 0
        %730 = vmatprep.subr.bf16.mxu0 0
        %731 = vmatpush1.bf16.msra.mxu0 0
        %732 = vmatprep.subr.bf16.mxu0 0
        %733 = vmatpush1.bf16.msra.mxu0 0
        %734 = vmatprep.subr.bf16.mxu0 0
        %735 = vmatpush1.bf16.msra.mxu0 0
        %736 = vmatprep.subr.bf16.mxu0 0
        %737 = vmatpush1.bf16.msra.mxu0 0
        %738 = vmatprep.subr.bf16.mxu0 0
        %739 = vmatpush1.bf16.msra.mxu0 0
        %740 = vmatprep.subr.bf16.mxu0 0
        %741 = vmatpush1.bf16.msra.mxu0 0
        %742 = vmatprep.subr.bf16.mxu0 0
        %743 = vmatpush1.bf16.msra.mxu0 0
        %744 = vmatprep.subr.bf16.mxu0 0
        %745 = vmatpush1.bf16.msra.mxu0 0
        %746 = vmatprep.subr.bf16.mxu0 0
        %747 = vmatpush1.bf16.msra.mxu0 0
        %748 = vmatprep.subr.bf16.mxu0 0
        %749 = vmatpush1.bf16.msra.mxu0 0
        %750 = vmatprep.subr.bf16.mxu0 0
        %751 = vmatpush1.bf16.msra.mxu0 0
        %752 = vmatprep.subr.bf16.mxu0 0
        %753 = vmatpush1.bf16.msra.mxu0 0
        %754 = vmatprep.subr.bf16.mxu0 0
        %755 = vmatpush1.bf16.msra.mxu0 0
        %756 = vmatprep.subr.bf16.mxu0 0
        %757 = vmatpush1.bf16.msra.mxu0 0
        %758 = vmatprep.mubr.bf16.mxu0 0
        %759 = vmatmul.mubr.bf16.gmra.mrb[0].mxu0 %v721
        %v760 = vpop.f32.mrb[0].mxu0
        %v761 = vadd.f32 0.0, %v760
        %v762 = vpop.f32.mrb[0].mxu0
        %v763 = vpop.f32.mrb[0].mxu0
        %v764 = vpop.f32.mrb[0].mxu0
        %765 = vdwg.mxu0
        %v766 = vmul.f32 %v761, %v716
        %v767 = vpack.c.bf16 %v766, %v766
        %v769 = vunpack.c.l.b16 %v767
        %v770 = vpack.c.b16 %v769, %v769
        %771 = vrot.lane.b32.xlu0 %v770, 24
        %v772 = vpop.permute.xlu0 %771
        %vm774 = vcmask 257216
        %775 = vst.msk [vmem:[#allocation2] sm:$0xf] %vm774, %v772
        %v776 = vld [vmem:[#allocation2] sm:$0xf]
        %v777 = vld [vmem:[#allocation8] sm:$0xf]
        %v778 = vld [vmem:[#allocation8 + $0x4] sm:$0xf]
        %v779 = vld [vmem:[#allocation8 + $0x8] sm:$0xf]
        %v780 = vld [vmem:[#allocation8 + $0xc] sm:$0xf]
        %v781 = vld [vmem:[%s3] sm:$0x1]
        %v783 = vlaneseq
        %v784 = vshrl.u32 %v783, 7
        %v785 = vsub.s32 0, %v784
        %v786 = vrot.slane %v781, %v785
        %v792 = vunpack.c.l.b16 %v777
        %v793 = vunpack.c.l.b16 %v778
        %v794 = vunpack.c.l.b16 %v779
        %v795 = vunpack.c.l.b16 %v780
        %v796 = vpack.c.b16 %v793, %v792
        %v797 = vpack.c.b16 %v795, %v794
        %v801 = vsel %vm260, %v776, 0
        %803 = vmatprep.subr.bf16.mxu0 0
        %804 = vmatpush1.bf16.msra.mxu0 %v796
        %805 = vmatprep.subr.bf16.mxu0 0
        %806 = vmatpush1.bf16.msra.mxu0 %v797
        %807 = vmatprep.subr.bf16.mxu0 0
        %808 = vmatpush1.bf16.msra.mxu0 0
        %809 = vmatprep.subr.bf16.mxu0 0
        %810 = vmatpush1.bf16.msra.mxu0 0
        %811 = vmatprep.subr.bf16.mxu0 0
        %812 = vmatpush1.bf16.msra.mxu0 0
        %813 = vmatprep.subr.bf16.mxu0 0
        %814 = vmatpush1.bf16.msra.mxu0 0
        %815 = vmatprep.subr.bf16.mxu0 0
        %816 = vmatpush1.bf16.msra.mxu0 0
        %817 = vmatprep.subr.bf16.mxu0 0
        %818 = vmatpush1.bf16.msra.mxu0 0
        %819 = vmatprep.subr.bf16.mxu0 0
        %820 = vmatpush1.bf16.msra.mxu0 0
        %821 = vmatprep.subr.bf16.mxu0 0
        %822 = vmatpush1.bf16.msra.mxu0 0
        %823 = vmatprep.subr.bf16.mxu0 0
        %824 = vmatpush1.bf16.msra.mxu0 0
        %825 = vmatprep.subr.bf16.mxu0 0
        %826 = vmatpush1.bf16.msra.mxu0 0
        %827 = vmatprep.subr.bf16.mxu0 0
        %828 = vmatpush1.bf16.msra.mxu0 0
        %829 = vmatprep.subr.bf16.mxu0 0
        %830 = vmatpush1.bf16.msra.mxu0 0
        %831 = vmatprep.subr.bf16.mxu0 0
        %832 = vmatpush1.bf16.msra.mxu0 0
        %833 = vmatprep.subr.bf16.mxu0 0
        %834 = vmatpush1.bf16.msra.mxu0 0
        %835 = vmatprep.mubr.bf16.mxu0 0
        %836 = vmatmul.mubr.bf16.gmra.mrb[0].mxu0 %v801
        %v837 = vpop.f32.mrb[0].mxu0
        %v838 = vadd.f32 %v786, %v837
        %v839 = vpop.f32.mrb[0].mxu0
        %v840 = vpop.f32.mrb[0].mxu0
        %v841 = vpop.f32.mrb[0].mxu0
        %842 = vdwg.mxu0
        %843 = vst.msk [vmem:[%s241] sm:$0xff] %vm260, %v838
        %s844 = sand.u32 %s119, 1
        %s845 = scalar_lea.sflag [#allocation5], %s844
        %s846 = sand.u32 %s119, 1
        %s847 = smul.addr %s846, 8
        %s848 = scalar_lea.vmem [#allocation9], %s847
        // Predicated region
        $region49: #{tpu_custom_call.1} parent=35 // pred_check
          %p849 = pneg %p129
        $region50: #{tpu_custom_call.1} parent=35 // pred_check_branch
          %851 = sbr.rel (%p849) target = $region52
        $region51: #{tpu_custom_call.1} parent=35 // pred_region
          %s853 = ssub.s32 128, 128
          %854 = vsyncadd %s845, %s853
          %s855 = smul.addr %s22, 128
          %s856 = scalar_lea.hbm %s4, %s855
          %s858 = sshll.u32 %s848, 4
          %s859 = int_to_ptr.vmem [resolvable:$true] %s858
          %861 = dma.vmem_to_hbm [thread:$0]  %s859, 128, %s856, %s845
        $region52: #{tpu_custom_call.1} parent=35 // pred_fallthru
          _
      $region36: #{tpu_custom_call.1} parent=5 // pred_fallthru
        _
      %p862 = scmp.le.s32.totalorder 2, %s17
      // Predicated region
      $region53: #{tpu_custom_call.1} parent=5 // pred_check
        %p863 = pneg %p862
      $region54: #{tpu_custom_call.1} parent=5 // pred_check_branch
        %865 = sbr.rel (%p863) target = $region56
      $region55: #{tpu_custom_call.1} parent=5 // pred_region
        %s866 = ssub.s32 %s17, 2
        // Predicated region
        $region57: #{tpu_custom_call.1} parent=55 // pred_check
          %p867 = pneg %p135
        $region58: #{tpu_custom_call.1} parent=55 // pred_check_branch
          %869 = sbr.rel (%p867) target = $region60
        $region59: #{tpu_custom_call.1} parent=55 // pred_region
          %s870 = sand.u32 %s120, 1
          %s871 = scalar_lea.sflag [#allocation5], %s870
          %s872 = sand.u32 %s120, 1
          %s873 = smul.addr %s872, 8
          %s874 = scalar_lea.vmem [#allocation9], %s873
          %875 = dma.done %s871, 128
        $region60: #{tpu_custom_call.1} parent=55 // pred_fallthru
          _
      $region56: #{tpu_custom_call.1} parent=5 // pred_fallthru
        _
    $region6: #{tpu_custom_call.1} parent=1 // loop_footer
      %s21 = sadd.s32 1, %s17
    $region7: #{tpu_custom_call.1} parent=1 // loop_footer_branch
      %16 = sbr.rel target = $region3
    $region8: #{tpu_custom_call.1} parent=1 // loop_exit
      _
    %876 = vsyncpa [#allocation4], 1
    %s877 = scalar_lea.sflag [#allocation4], 1
    %878 = vsyncpa %s877, 1
    %879 = vsyncpa [#allocation7], 1
    %880 = vsyncpa [#allocation5], 1
    %s881 = scalar_lea.sflag [#allocation5], 1
    %882 = vsyncpa %s881, 1

</llo_original>
